<compile_context>
chip_gen: v7x
topology: tpu7x:2x2x1
jax: 0.10.0
libtpu: 0.0.40
codegen_flags: <defaults>
</compile_context>

<pallas_src>
import functools

import jax
import jax.numpy as jnp
from jax.experimental import pallas as pl
from jax.experimental.pallas import tpu as pltpu


# ---------------------------------------------------------------------------
# Kernels
# ---------------------------------------------------------------------------

def _frn_kernel(x_ref, p_ref, o_ref):
    """Fused single-pass FRN on one (row_tile, HW) tile.

    p_ref columns: 0=gamma, 1=beta, 2=tau, 3=eps  (one value per (n,c) row).
    """
    xn = x_ref[...]                                    # (TR, HW), input dtype
    xf = xn.astype(jnp.float32)
    g = p_ref[:, 0:1]
    b = p_ref[:, 1:2]
    t = p_ref[:, 2:3]
    eps = p_ref[:, 3:4]

    # nu2 = mean(x^2) over the spatial axis, per (n, c) row.
    nu2 = jnp.mean(xf * xf, axis=-1, keepdims=True)    # (TR, 1)

    # Fold gamma into the per-row scale: one (TR,1) mul instead of a
    # full-width (TR,HW) mul; rsqrt issues on the EUP slot (nearly free).
    scale = g * jax.lax.rsqrt(nu2 + eps)               # (TR, 1)

    if xn.dtype == jnp.bfloat16:
        # Keep the wide elementwise chain in bf16; only x*x ran in f32.
        y = xn * scale.astype(xn.dtype) + b.astype(xn.dtype)
        o_ref[...] = jnp.maximum(y, t.astype(xn.dtype)).astype(o_ref.dtype)
    else:
        o_ref[...] = jnp.maximum(xf * scale + b, t).astype(o_ref.dtype)


def _nu2_sum_kernel(x_ref, s_ref, *, hw_tile, hw_total):
    """Pass 1 of the HW-tiled fallback: accumulate per-row sum(x^2)."""
    k = pl.program_id(1)

    @pl.when(k == 0)
    def _():
        s_ref[...] = jnp.zeros_like(s_ref)

    xf = x_ref[...].astype(jnp.float32)
    if hw_total % hw_tile != 0:
        # Ragged last HW block: zero out-of-range lanes before reducing.
        col = jax.lax.broadcasted_iota(jnp.int32, xf.shape, 1) + k * hw_tile
        xf = jnp.where(col < hw_total, xf, 0.0)
    s_ref[...] += jnp.sum(xf * xf, axis=-1, keepdims=True)


def _apply_kernel(x_ref, p_ref, o_ref):
    """Pass 2 of the HW-tiled fallback: y = max(x * scale + beta, tau).

    p_ref columns: 0=scale (= gamma * rsqrt(nu2 + eps)), 1=beta, 2=tau.
    """
    xn = x_ref[...]
    scale = p_ref[:, 0:1]
    b = p_ref[:, 1:2]
    t = p_ref[:, 2:3]
    if xn.dtype == jnp.bfloat16:
        y = xn * scale.astype(xn.dtype) + b.astype(xn.dtype)
        o_ref[...] = jnp.maximum(y, t.astype(xn.dtype)).astype(o_ref.dtype)
    else:
        y = xn.astype(jnp.float32) * scale + b
        o_ref[...] = jnp.maximum(y, t).astype(o_ref.dtype)


# ---------------------------------------------------------------------------
# Tiling helpers
# ---------------------------------------------------------------------------

def _vmem_budget_and_limit():
    """(tile working-set budget, vmem_limit_bytes), generation-aware."""
    cap = None
    try:
        cap = getattr(pltpu.get_tpu_info(), "vmem_capacity_bytes", None)
    except Exception:
        cap = None
    if cap is None:
        cap = 64 * 1024 * 1024                 # unknown: assume v7x-class 64 MiB/TC
    if cap >= 128 * 1024 * 1024:               # v5e / v6e (128 MiB VMEM)
        return 32 * 1024 * 1024, 96 * 1024 * 1024
    return 16 * 1024 * 1024, 40 * 1024 * 1024  # v7x (64 MiB VMEM)


def _sublane(itemsize):
    return max(8, 32 // itemsize)              # 8 f32, 16 bf16, 32 int8


def _pick_row_tile(R, HW, itemsize, budget):
    """Largest sublane-multiple row tile whose double-buffered in+out tiles
    fit the budget; splits into >= 2 grid steps when the whole slab fits."""
    sub = _sublane(itemsize)
    if R <= sub:
        return R                               # single full-dim block (always legal)
    per_row = 4 * HW * itemsize                # 2 input + 2 output buffers per row
    cap = (budget // max(per_row, 1)) // sub * sub
    cap = max(sub, min(1024, cap))
    rt = min(cap, R)
    if rt >= R:
        # Whole slab would fit one tile: split into >= 2 steps so both v7x
        # TensorCores get work (no-op on single-TC v5e/v6e).
        half = pl.cdiv(R, 2)
        rt = pl.cdiv(half, sub) * sub
    return max(sub, (rt // sub) * sub)


def _pick_hw_tile(HW, row_tile, itemsize, budget):
    """128-multiple HW chunk for the two-pass fallback path."""
    if HW <= 128:
        return HW
    cap = budget // max(4 * row_tile * itemsize, 1)
    cap = max(128, (cap // 128) * 128)
    full = max(128, (HW // 128) * 128)
    return min(cap, full)


# ---------------------------------------------------------------------------
# Wrapper
# ---------------------------------------------------------------------------

@functools.partial(
    jax.jit, static_argnames=("row_tile", "donate_x", "force_hw_tiling"))
def filter_response_norm2d(x, gamma, beta, tau, eps_total, *,
                           row_tile=None, donate_x=False,
                           force_hw_tiling=False):
    """FilterResponseNorm2d forward.

    Args:
      x:          (N, C, H, W) input.
      gamma, beta, tau: (1, C, 1, 1) parameters.
      eps_total:  scalar, eps + |eps_l_frn|.
      row_tile:   optional row-tile override.
      donate_x:   alias x's buffer to the output (for callers that no longer
                  need x) -- same bandwidth, half the HBM footprint.
      force_hw_tiling: force the two-pass HW-tiled fallback (for testing).
    Returns:
      (N, C, H, W) output, same dtype as x.
    """
    N, C, H, W = x.shape
    R, HW = N * C, H * W
    itemsize = x.dtype.itemsize
    budget, vmem_limit = _vmem_budget_and_limit()
    sub = _sublane(itemsize)

    x2d = x.reshape(R, HW)                                  # no-copy view
    eps_f = jnp.asarray(eps_total, jnp.float32).reshape(())

    def _rows(p):                                           # (1,C,1,1) -> (R,1) f32
        return jnp.broadcast_to(
            p.reshape(1, C).astype(jnp.float32), (N, C)).reshape(R, 1)

    g, b, t = _rows(gamma), _rows(beta), _rows(tau)
    io_alias = {0: 0} if donate_x else {}

    needs_hw_tiling = force_hw_tiling or (4 * min(R, sub) * HW * itemsize > budget)

    if not needs_hw_tiling:
        # ---- single fused pass: 1 HBM read + 1 HBM write of x -------------
        rt = row_tile if row_tile is not None else _pick_row_tile(
            R, HW, itemsize, budget)
        grid = pl.cdiv(R, rt)
        params = jnp.concatenate(
            [g, b, t, jnp.broadcast_to(eps_f, (R, 1))], axis=1)   # (R, 4)

        out2d = pl.pallas_call(
            _frn_kernel,
            out_shape=jax.ShapeDtypeStruct((R, HW), x.dtype),
            grid_spec=pltpu.PrefetchScalarGridSpec(
                num_scalar_prefetch=0,
                grid=(grid,),
                in_specs=[
                    pl.BlockSpec((rt, HW), lambda i: (i, 0)),      # x tile
                    pl.BlockSpec((rt, 4), lambda i: (i, 0)),       # packed params
                ],
                out_specs=pl.BlockSpec((rt, HW), lambda i: (i, 0)),
            ),
            compiler_params=pltpu.CompilerParams(
                dimension_semantics=("parallel",),
                vmem_limit_bytes=vmem_limit,
            ),
            cost_estimate=pl.CostEstimate(
                flops=5 * R * HW, transcendentals=R,
                bytes_accessed=2 * R * HW * itemsize + 16 * R),
            input_output_aliases=io_alias,
        )(x2d, params)
        return out2d.reshape(N, C, H, W)

    # ---- fallback: H*W too large for a full-row tile in VMEM --------------
    # Two mem-bound passes (~1.5x HBM traffic): (1) per-row sum(x^2) with the
    # HW axis tiled; (2) apply per-row scale / beta / tau.
    rt = min(R, sub)
    hwt = _pick_hw_tile(HW, rt, itemsize, budget)
    rb, kb = pl.cdiv(R, rt), pl.cdiv(HW, hwt)

    nu2_sum = pl.pallas_call(
        functools.partial(_nu2_sum_kernel, hw_tile=hwt, hw_total=HW),
        out_shape=jax.ShapeDtypeStruct((R, 1), jnp.float32),
        grid_spec=pltpu.PrefetchScalarGridSpec(
            num_scalar_prefetch=0,
            grid=(rb, kb),
            in_specs=[pl.BlockSpec((rt, hwt), lambda i, k: (i, k))],
            out_specs=pl.BlockSpec((rt, 1), lambda i, k: (i, 0)),
        ),
        compiler_params=pltpu.CompilerParams(
            dimension_semantics=("parallel", "arbitrary"),
            vmem_limit_bytes=vmem_limit,
        ),
        cost_estimate=pl.CostEstimate(
            flops=2 * R * HW, transcendentals=0,
            bytes_accessed=R * HW * itemsize + 4 * R),
    )(x2d)

    nu2 = nu2_sum * (1.0 / HW)                               # tiny (R,1) XLA ops
    scale = g * jax.lax.rsqrt(nu2 + eps_f)
    params = jnp.concatenate([scale, b, t], axis=1)          # (R, 3)

    out2d = pl.pallas_call(
        _apply_kernel,
        out_shape=jax.ShapeDtypeStruct((R, HW), x.dtype),
        grid_spec=pltpu.PrefetchScalarGridSpec(
            num_scalar_prefetch=0,
            grid=(rb, kb),
            in_specs=[
                pl.BlockSpec((rt, hwt), lambda i, k: (i, k)),
                pl.BlockSpec((rt, 3), lambda i, k: (i, 0)),
            ],
            out_specs=pl.BlockSpec((rt, hwt), lambda i, k: (i, k)),
        ),
        compiler_params=pltpu.CompilerParams(
            dimension_semantics=("parallel", "parallel"),
            vmem_limit_bytes=vmem_limit,
        ),
        cost_estimate=pl.CostEstimate(
            flops=3 * R * HW, transcendentals=0,
            bytes_accessed=2 * R * HW * itemsize + 12 * R),
        input_output_aliases=io_alias,
    )(x2d, params)
    return out2d.reshape(N, C, H, W)


def frn_reference(x, gamma, beta, tau, eps_total):
    """Pure-JAX reference matching the PyTorch forward."""
    xf = x.astype(jnp.float32)
    nu2 = jnp.mean(jnp.square(xf), axis=(2, 3), keepdims=True)
    y = xf * jax.lax.rsqrt(nu2 + eps_total)
    y = gamma * y + beta
    return jnp.maximum(y, tau).astype(x.dtype)


if __name__ == "__main__":
    key = jax.random.PRNGKey(0)
    k0, k1, k2, k3, k4, k5 = jax.random.split(key, 6)

    # --- case 1: module defaults (gamma=1, beta=0, tau=0), lane-aligned HW --
    num_features = 4
    eps = 1e-6
    gamma = jnp.ones((1, num_features, 1, 1), jnp.float32)
    beta = jnp.zeros((1, num_features, 1, 1), jnp.float32)
    tau = jnp.zeros((1, num_features, 1, 1), jnp.float32)
    eps_l = jnp.zeros((1,), jnp.float32)                    # learnable_eps=False
    eps_total = eps + jnp.abs(eps_l)[0]

    x = jax.random.normal(k0, (2, num_features, 16, 16), jnp.float32)
    out = jax.block_until_ready(filter_response_norm2d(x, gamma, beta, tau, eps_total))
    ref = frn_reference(x, gamma, beta, tau, eps_total)
    assert out.shape == x.shape and out.dtype == x.dtype
    assert jnp.allclose(out, ref, atol=1e-5, rtol=1e-5), "case 1 mismatch"

    # --- case 2: ragged rows + non-128 lanes + non-trivial params -----------
    C2 = 5
    x2 = jax.random.normal(k1, (3, C2, 9, 7), jnp.float32)          # R=15, HW=63
    g2 = jax.random.normal(k2, (1, C2, 1, 1), jnp.float32)
    b2 = jax.random.normal(k3, (1, C2, 1, 1), jnp.float32)
    t2 = jax.random.normal(k4, (1, C2, 1, 1), jnp.float32)
    eps2 = jnp.float32(1e-6 + abs(1e-4))                            # learnable_eps path
    out2 = jax.block_until_ready(filter_response_norm2d(x2, g2, b2, t2, eps2))
    ref2 = frn_reference(x2, g2, b2, t2, eps2)
    assert out2.shape == x2.shape and out2.dtype == x2.dtype
    assert jnp.allclose(out2, ref2, atol=1e-5, rtol=1e-5), "case 2 mismatch"

    # --- case 3: exercise the two-pass HW-tiled fallback (ragged both axes) -
    x3 = jax.random.normal(k5, (3, C2, 20, 20), jnp.float32)        # R=15, HW=400
    out3 = jax.block_until_ready(
        filter_response_norm2d(x3, g2, b2, t2, eps2, force_hw_tiling=True))
    ref3 = frn_reference(x3, g2, b2, t2, eps2)
    assert jnp.allclose(out3, ref3, atol=1e-5, rtol=1e-5), "case 3 mismatch"

    # --- case 4: bf16 input (bf16 apply path) --------------------------------
    xb = jax.random.normal(k0, (2, num_features, 16, 16), jnp.float32).astype(jnp.bfloat16)
    outb = jax.block_until_ready(filter_response_norm2d(xb, gamma, beta, tau, eps_total))
    refb = frn_reference(xb, gamma, beta, tau, eps_total)
    assert outb.dtype == jnp.bfloat16
    assert jnp.allclose(outb.astype(jnp.float32), refb.astype(jnp.float32),
                        atol=5e-2, rtol=5e-2), "case 4 mismatch"

    # --- case 5: input/output aliasing enabled ------------------------------
    out5 = jax.block_until_ready(
        filter_response_norm2d(x, gamma, beta, tau, eps_total, donate_x=True))
    assert jnp.allclose(out5, ref, atol=1e-5, rtol=1e-5), "case 5 mismatch"

    print("KERNEL_OK")
</pallas_src>

<mosaic_0001>
module attributes {stable_mosaic.version = 11 : i64} {
  func.func @_frn_kernel(%arg0: i32, %arg1: memref<8x256xf32, #tpu.memory_space<vmem>>, %arg2: memref<8x4xf32, #tpu.memory_space<vmem>>, %arg3: memref<8x256xf32, #tpu.memory_space<vmem>>) attributes {dimension_semantics = [#tpu.dimension_semantics<parallel>], iteration_bounds = array<i64: 1>, scalar_prefetch = 0 : i64, scratch_operands = 0 : i64, tpu.core_type = #tpu.core_type<tc>, window_params = [{transform_indices = @transform_0, window_bounds = array<i64: 8, 256>}, {transform_indices = @transform_1, window_bounds = array<i64: 8, 4>}, {transform_indices = @transform_2, window_bounds = array<i64: 8, 256>}]} {
    %c0 = arith.constant 0 : index
    %c0_0 = arith.constant 0 : index
    %0 = vector.load %arg1[%c0, %c0_0] : memref<8x256xf32, #tpu.memory_space<vmem>>, vector<8x256xf32>
    %c0_1 = arith.constant 0 : index
    %c0_2 = arith.constant 0 : index
    %1 = vector.load %arg2[%c0_1, %c0_2] : memref<8x4xf32, #tpu.memory_space<vmem>>, vector<8x1xf32>
    %c0_3 = arith.constant 0 : index
    %c1 = arith.constant 1 : index
    %2 = vector.load %arg2[%c0_3, %c1] : memref<8x4xf32, #tpu.memory_space<vmem>>, vector<8x1xf32>
    %c0_4 = arith.constant 0 : index
    %c2 = arith.constant 2 : index
    %3 = vector.load %arg2[%c0_4, %c2] : memref<8x4xf32, #tpu.memory_space<vmem>>, vector<8x1xf32>
    %c0_5 = arith.constant 0 : index
    %c3 = arith.constant 3 : index
    %4 = vector.load %arg2[%c0_5, %c3] : memref<8x4xf32, #tpu.memory_space<vmem>>, vector<8x1xf32>
    %5 = arith.mulf %0, %0 : vector<8x256xf32>
    %cst = arith.constant dense<0.000000e+00> : vector<8xf32>
    %6 = vector.multi_reduction <add>, %5, %cst [1] : vector<8x256xf32> to vector<8xf32>
    %7 = vector.shape_cast %6 : vector<8xf32> to vector<8x1xf32>
    %cst_6 = arith.constant 2.560000e+02 : f32
    %8 = vector.broadcast %cst_6 : f32 to vector<8x1xf32>
    %9 = arith.divf %7, %8 : vector<8x1xf32>
    %10 = arith.addf %9, %4 : vector<8x1xf32>
    %11 = math.rsqrt %10 : vector<8x1xf32>
    %12 = arith.mulf %1, %11 : vector<8x1xf32>
    %13 = vector.broadcast %12 : vector<8x1xf32> to vector<8x256xf32>
    %14 = arith.mulf %0, %13 : vector<8x256xf32>
    %15 = vector.broadcast %2 : vector<8x1xf32> to vector<8x256xf32>
    %16 = arith.addf %14, %15 : vector<8x256xf32>
    %17 = vector.broadcast %3 : vector<8x1xf32> to vector<8x256xf32>
    %18 = arith.maximumf %16, %17 : vector<8x256xf32>
    %c0_7 = arith.constant 0 : index
    %c0_8 = arith.constant 0 : index
    %19 = vector.load %arg3[%c0_7, %c0_8] : memref<8x256xf32, #tpu.memory_space<vmem>>, vector<8x256xf32>
    tpu.vector_store %arg3[%c0_7, %c0_8], %18 {strides = array<i32>} : memref<8x256xf32, #tpu.memory_space<vmem>>, vector<8x256xf32>,
    return
  }
  func.func @transform_0(%arg0: i32) -> (i32, i32) {
    %c0_i32 = arith.constant 0 : i32
    %c0_i32_0 = arith.constant 0 : i32
    return %arg0, %c0_i32 : i32, i32
  }
  func.func @transform_1(%arg0: i32) -> (i32, i32) {
    %c0_i32 = arith.constant 0 : i32
    %c0_i32_0 = arith.constant 0 : i32
    return %arg0, %c0_i32 : i32, i32
  }
  func.func @transform_2(%arg0: i32) -> (i32, i32) {
    %c0_i32 = arith.constant 0 : i32
    %c0_i32_0 = arith.constant 0 : i32
    return %arg0, %c0_i32 : i32, i32
  }
}

</mosaic_0001>

<llo_original>
// kernel: filter_response_norm2d.1
$region0: #{filter_response_norm2d.1}
  #allocation0 [shape = 'u32[]', space=smem, size = 0x4, offset = 0x4, fixed_abs, tag = 'smem constant byte address 0x4 - core index']
  #allocation1 [shape = 'u32[144,128]{1,0:T(1,128)}', space=vmem, size = 0x12000, scoped, tag = 'internal scratch']
  %s0 = inlined_call_operand.vmem [shape: f32[8,256], index: 0, kind: input, shape index: {}]
  %s1 = inlined_call_operand.vmem [shape: f32[8,4], index: 1, kind: input, shape index: {}]
  %s2 = inlined_call_operand.vmem [shape: f32[8,256], index: 2, kind: output, shape index: {}]
  %s3 = sld [smem:[#allocation0]]
  $region18: #{filter_response_norm2d.1} parent=0
    _
  %s5 = ssub.s32 1, %s3
  %s6 = scalar_select 0, %s5, %s3
  // Predicated region
  $region2: #{filter_response_norm2d.1} parent=0 // pred_check
    _
  $region3: #{filter_response_norm2d.1} parent=0 // pred_check_branch
    %8 = sbr.rel (0) target = $region5
  $region4: #{filter_response_norm2d.1} parent=0 // pred_region
    _
  $region5: #{filter_response_norm2d.1} parent=0 // pred_fallthru
    _
  // Predicated region
  $region6: #{filter_response_norm2d.1} parent=0 // pred_check
    _
  $region7: #{filter_response_norm2d.1} parent=0 // pred_check_branch
    %10 = sbr.rel (0) target = $region9
  $region8: #{filter_response_norm2d.1} parent=0 // pred_region
    _
  $region9: #{filter_response_norm2d.1} parent=0 // pred_fallthru
    _
  %v11 = vld [vmem:[%s0] sm:$0xff]
  %v12 = vld [vmem:[%s0 + $0x8] sm:$0xff]
  %v13 = vld [vmem:[%s1] sm:$0xff]
  %v14 = vmul.f32 %v11, %v11
  %v15 = vmul.f32 %v12, %v12
  %v16 = vadd.f32 %v14, %v15
  %17 = vadd.xlane.f32.xlu0 %v16
  %v18 = vpop.xlane.xlu0 %17
  %v19 = vrcp.pop 256.0
  %v20 = vmul.f32 %v18, %v19
  %v21 = vadd.f32 %v20, %v13
  %v22 = vrsqrt.pop %v21
  %24 = vrot.lane.b32.xlu0 %v22, 125
  %v25 = vpop.permute.xlu0 %24
  %v27 = vmul.f32 %v13, %v25
  %29 = vset.pattern.permute.xlu0 0
  %30 = vperm.xlu0 %29, %v27
  %v31 = vpop.permute.xlu0 %30
  %v33 = vmul.f32 %v11, %v31
  %v34 = vmul.f32 %v12, %v31
  %36 = vset.pattern.permute.xlu0 1
  %37 = vperm.xlu0 %36, %v13
  %v38 = vpop.permute.xlu0 %37
  %v40 = vadd.f32 %v33, %v38
  %v41 = vadd.f32 %v34, %v38
  %42 = vset.pattern.permute.xlu0 2
  %43 = vperm.xlu0 %42, %v13
  %v44 = vpop.permute.xlu0 %43
  %v46 = vmax.f32 %v40, %v44
  %v47 = vmax.f32 %v41, %v44
  %48 = vst [vmem:[%s2] sm:$0xff] %v46
  %49 = vst [vmem:[%s2 + $0x8] sm:$0xff] %v47
  // Predicated region
  $region10: #{filter_response_norm2d.1} parent=0 // pred_check
    _
  $region11: #{filter_response_norm2d.1} parent=0 // pred_check_branch
    %51 = sbr.rel (0) target = $region13
  $region12: #{filter_response_norm2d.1} parent=0 // pred_region
    _
  $region13: #{filter_response_norm2d.1} parent=0 // pred_fallthru
    _
  // Predicated region
  $region14: #{filter_response_norm2d.1} parent=0 // pred_check
    _
  $region15: #{filter_response_norm2d.1} parent=0 // pred_check_branch
    %53 = sbr.rel (0) target = $region17
  $region16: #{filter_response_norm2d.1} parent=0 // pred_region
    _
  $region17: #{filter_response_norm2d.1} parent=0 // pred_fallthru
    _

</llo_original>
